<compile_context>
chip_gen: v5e
topology: v5e:2x2
jax: 0.10.0
libtpu: 0.0.40
codegen_flags: <defaults>
</compile_context>

<pallas_src>
import functools

import jax
import jax.numpy as jnp
from jax.experimental import pallas as pl
from jax.experimental.pallas import tpu as pltpu


# -----------------------------------------------------------------------------
# Kernels
# -----------------------------------------------------------------------------

def _se_fused_kernel(x_ref, w1t_ref, b1_ref, w2t_ref, b2_ref, o_ref):
    """Single-pass SE for one (BB, C, T) batch block.

    x_ref : (BB, C, T)   w1t_ref: (C, H)   b1_ref: (1, H)
    w2t_ref: (H, C)      b2_ref : (1, C)   o_ref : (BB, C, T)
    """
    xb = x_ref[...]
    # Squeeze: mean over T (lane reduction), f32 accumulation.
    s = jnp.mean(xb.astype(jnp.float32), axis=-1)                       # (BB, C)
    # Excite: batched matmuls on pre-transposed weights (no in-kernel transposes).
    h = jnp.dot(s, w1t_ref[...], preferred_element_type=jnp.float32) + b1_ref[...]
    h = jnp.maximum(h, 0.0)                                              # (BB, H)
    z = jnp.dot(h, w2t_ref[...], preferred_element_type=jnp.float32) + b2_ref[...]
    scale = jax.nn.sigmoid(z)[:, :, None]                                # (BB, C, 1) f32
    # Rescale: keep scale in f32, cast only the final product.
    o_ref[...] = (xb * scale).astype(o_ref.dtype)


def _se_scale_kernel(x_ref, w1_ref, b1_ref, w2_ref, b2_ref, scale_ref, acc_ref,
                     *, inv_t):
    """Blocked pass 1: accumulate the T-mean over T blocks, finalize excitation.

    x_ref : (1, C, TB)   w1_ref: (H, C)   b1_ref: (H, 1)
    w2_ref: (C, H)       b2_ref: (C, 1)   scale_ref: (1, C, 1)   acc_ref: (C, 1) f32
    """
    t = pl.program_id(1)

    @pl.when(t == 0)
    def _():
        acc_ref[...] = jnp.zeros_like(acc_ref)

    acc_ref[...] += jnp.sum(x_ref[0].astype(jnp.float32), axis=-1, keepdims=True)

    @pl.when(t == pl.num_programs(1) - 1)
    def _():
        s = acc_ref[...] * inv_t                                         # (C, 1)
        h = jnp.dot(w1_ref[...], s, preferred_element_type=jnp.float32) + b1_ref[...]
        h = jnp.maximum(h, 0.0)                                          # (H, 1)
        z = jnp.dot(w2_ref[...], h, preferred_element_type=jnp.float32) + b2_ref[...]
        scale_ref[0] = jax.nn.sigmoid(z)                                 # (C, 1) f32


def _se_rescale_kernel(x_ref, scale_ref, o_ref):
    """Blocked pass 2: stream lane-dense T blocks, multiply by the f32 scale."""
    o_ref[...] = (x_ref[...] * scale_ref[...]).astype(o_ref.dtype)


# -----------------------------------------------------------------------------
# Scheduling heuristics
# -----------------------------------------------------------------------------

def _vmem_cap_bytes():
    """Generation-aware scoped-VMEM cap: physical VMEM minus ~16 MiB headroom.

    ~112 MiB on v5e/v6e (128 MiB physical), ~48 MiB on v7x (64 MiB physical).
    """
    try:
        physical = int(pltpu.get_tpu_info().vmem_capacity_bytes)
    except Exception:            # conservative (v7x-sized) default
        physical = 64 << 20
    return max(physical - (16 << 20), 32 << 20)


def _pick_batch_block(batch, per_batch_bytes):
    """Largest divisor of `batch` whose block is <= ~8 MiB.

    Fills sublanes/lanes and amortizes per-grid-step overhead for tiny C*T.
    """
    target = 8 << 20
    divs = [d for d in range(1, batch + 1) if batch % d == 0]
    fitting = [d for d in divs if d * per_batch_bytes <= target]
    bb = max(fitting) if fitting else 1
    # v7x megacore: keep >= 2 parallel grid steps when there is enough data to matter.
    if bb == batch and batch > 1 and batch * per_batch_bytes >= (1 << 20):
        smaller = [d for d in divs if d < batch]
        if smaller:
            bb = max(smaller)
    return bb


def _pick_t_block(C, T, itemsize, budget):
    """Lane-dense (multiple-of-128) T block for the two-pass schedule."""
    def fits(tb):
        # pass 2: x in + out, double-buffered (4 tiles), plus the scale column.
        return 5 * C * tb * itemsize <= budget

    lane_dense = [tb for tb in range(128, T + 1, 128) if T % tb == 0 and fits(tb)]
    preferred = [tb for tb in lane_dense if 512 <= tb <= 2048]
    if preferred:
        return max(preferred)
    if lane_dense:
        return max(lane_dense)
    # TODO(synk): pad T once in the wrapper so ragged T still gets lane-dense
    # (unmasked vst) stores instead of falling back to a divisor block.
    any_div = [tb for tb in range(1, T + 1) if T % tb == 0 and fits(tb)]
    if not any_div:
        raise ValueError(
            "SqueezeExcitation: channel dimension too large to fit even a "
            "minimal T block in VMEM; no valid schedule.")
    return max(any_div)


# -----------------------------------------------------------------------------
# Wrapper
# -----------------------------------------------------------------------------

def squeeze_excitation(x, w1, b1, w2, b2, *, force_blocked=False):
    """x: (B, C, T); w1: (H, C); b1: (H,); w2: (C, H); b2: (C,)."""
    B, C, T = x.shape
    H = w1.shape[0]
    itemsize = jnp.dtype(x.dtype).itemsize
    cap = _vmem_cap_bytes()

    # Weights/biases are single-buffered (constant block index) -> 1x param bytes.
    param_bytes = 4 * (2 * H * C + H + C)
    per_batch_bytes = C * T * itemsize

    bb = _pick_batch_block(B, per_batch_bytes)
    fused_needed = 4 * bb * per_batch_bytes + param_bytes + (1 << 20)

    def const_spec(shape):
        # Constant-index block: single-buffered, never re-DMA'd per grid step.
        return pl.BlockSpec(shape, lambda *_: (0,) * len(shape),
                            pipeline_mode=pl.Buffered(1))

    if not force_blocked and fused_needed <= cap:
        # ------------------- fused single-pass path -------------------
        w1t = jnp.transpose(w1)          # (C, H)   host-side, one-time
        w2t = jnp.transpose(w2)          # (H, C)
        b1r = b1.reshape(1, H)
        b2r = b2.reshape(1, C)
        cost = pl.CostEstimate(
            flops=int(2 * B * C * T + 4 * B * C * H),
            transcendentals=int(B * C),
            bytes_accessed=int(2 * B * C * T * itemsize + param_bytes),
        )
        return pl.pallas_call(
            _se_fused_kernel,
            out_shape=jax.ShapeDtypeStruct((B, C, T), x.dtype),
            grid_spec=pltpu.PrefetchScalarGridSpec(
                num_scalar_prefetch=0,
                grid=(B // bb,),
                in_specs=[
                    pl.BlockSpec((bb, C, T), lambda i: (i, 0, 0)),
                    const_spec((C, H)),
                    const_spec((1, H)),
                    const_spec((H, C)),
                    const_spec((1, C)),
                ],
                out_specs=pl.BlockSpec((bb, C, T), lambda i: (i, 0, 0)),
            ),
            compiler_params=pltpu.CompilerParams(
                dimension_semantics=("parallel",),
                vmem_limit_bytes=int(min(max(fused_needed, 16 << 20), cap)),
            ),
            cost_estimate=cost,
        )(x, w1t, b1r, w2t, b2r)

    # ----------- blocked two-pass path (large C*T / v7x 64 MiB VMEM) -----------
    budget = max(cap - param_bytes - (1 << 20), 1 << 20)
    tb = _pick_t_block(C, T, itemsize, budget)
    n_t = T // tb

    b1c = b1.reshape(H, 1)
    b2c = b2.reshape(C, 1)

    # Pass 1: blockwise f32 sum over T into a (C,1) scratch, then excitation.
    scale = pl.pallas_call(
        functools.partial(_se_scale_kernel, inv_t=1.0 / float(T)),
        out_shape=jax.ShapeDtypeStruct((B, C, 1), jnp.float32),
        grid_spec=pltpu.PrefetchScalarGridSpec(
            num_scalar_prefetch=0,
            grid=(B, n_t),
            in_specs=[
                pl.BlockSpec((1, C, tb), lambda b, t: (b, 0, t)),
                const_spec((H, C)),
                const_spec((H, 1)),
                const_spec((C, H)),
                const_spec((C, 1)),
            ],
            out_specs=pl.BlockSpec((1, C, 1), lambda b, t: (b, 0, 0)),
            scratch_shapes=[pltpu.VMEM((C, 1), jnp.float32)],
        ),
        compiler_params=pltpu.CompilerParams(
            dimension_semantics=("parallel", "arbitrary"),
            vmem_limit_bytes=int(cap),
        ),
    )(x, w1, b1c, w2, b2c)

    # Pass 2: stream lane-dense T blocks and rescale (both axes parallel so both
    # v7x TensorCores get work).
    cost = pl.CostEstimate(
        flops=int(B * C * T),
        transcendentals=0,
        bytes_accessed=int(2 * B * C * T * itemsize + B * C * 4),
    )
    return pl.pallas_call(
        _se_rescale_kernel,
        out_shape=jax.ShapeDtypeStruct((B, C, T), x.dtype),
        grid_spec=pltpu.PrefetchScalarGridSpec(
            num_scalar_prefetch=0,
            grid=(B, n_t),
            in_specs=[
                pl.BlockSpec((1, C, tb), lambda b, t: (b, 0, t)),
                pl.BlockSpec((1, C, 1), lambda b, t: (b, 0, 0)),
            ],
            out_specs=pl.BlockSpec((1, C, tb), lambda b, t: (b, 0, t)),
        ),
        compiler_params=pltpu.CompilerParams(
            dimension_semantics=("parallel", "parallel"),
            vmem_limit_bytes=int(cap),
        ),
        cost_estimate=cost,
    )(x, scale)


# -----------------------------------------------------------------------------
# Reference + test
# -----------------------------------------------------------------------------

def reference(x, w1, b1, w2, b2):
    s = x.mean(axis=2)
    s = jnp.maximum(s @ w1.T + b1, 0.0)
    s = jax.nn.sigmoid(s @ w2.T + b2)
    return x * s[:, :, None]


def _make_params(key, C, H):
    k1, k2, k3, k4 = jax.random.split(key, 4)
    bound1 = 1.0 / jnp.sqrt(C)
    w1 = jax.random.uniform(k1, (H, C), jnp.float32, -bound1, bound1)
    b1 = jax.random.uniform(k2, (H,), jnp.float32, -bound1, bound1)
    bound2 = 1.0 / jnp.sqrt(H)
    w2 = jax.random.uniform(k3, (C, H), jnp.float32, -bound2, bound2)
    b2 = jax.random.uniform(k4, (C,), jnp.float32, -bound2, bound2)
    return w1, b1, w2, b2


if __name__ == "__main__":
    key = jax.random.PRNGKey(0)
    k_small, k_big = jax.random.split(key)

    # 1) The module's real (tiny) shapes: inplanes=4, reduction_ratio=2 -> H=2.
    #    Exercises the fused batch-blocked path.
    B, C, T = 2, 4, 16
    H = max(int(C / 2), 1)
    kx, kp = jax.random.split(k_small)
    x = jax.random.normal(kx, (B, C, T), dtype=jnp.float32)
    w1, b1, w2, b2 = _make_params(kp, C, H)
    out = jax.block_until_ready(squeeze_excitation(x, w1, b1, w2, b2))
    ref = reference(x, w1, b1, w2, b2)
    assert out.shape == (B, C, T)
    assert jnp.allclose(out, ref, atol=1e-5, rtol=1e-5), "fused path mismatch"

    # 2) Exercise the blocked two-pass schedule (lane-dense 2048-wide T blocks,
    #    multi-block mean accumulation) on still-small data.
    B2, C2, T2 = 2, 8, 4096
    H2 = max(int(C2 / 2), 1)
    kx2, kp2 = jax.random.split(k_big)
    x2 = jax.random.normal(kx2, (B2, C2, T2), dtype=jnp.float32)
    w1b, b1b, w2b, b2b = _make_params(kp2, C2, H2)
    out2 = jax.block_until_ready(
        squeeze_excitation(x2, w1b, b1b, w2b, b2b, force_blocked=True))
    ref2 = reference(x2, w1b, b1b, w2b, b2b)
    assert out2.shape == (B2, C2, T2)
    assert jnp.allclose(out2, ref2, atol=1e-5, rtol=1e-5), "blocked path mismatch"

    print("KERNEL_OK")
</pallas_src>

<mosaic_0001>
module attributes {stable_mosaic.version = 11 : i64} {
  func.func @_se_fused_kernel(%arg0: i32, %arg1: memref<2x4x16xf32, #tpu.memory_space<vmem>>, %arg2: memref<4x2xf32, #tpu.memory_space<vmem>>, %arg3: memref<1x2xf32, #tpu.memory_space<vmem>>, %arg4: memref<2x4xf32, #tpu.memory_space<vmem>>, %arg5: memref<1x4xf32, #tpu.memory_space<vmem>>, %arg6: memref<2x4x16xf32, #tpu.memory_space<vmem>>) attributes {dimension_semantics = [#tpu.dimension_semantics<parallel>], iteration_bounds = array<i64: 1>, scalar_prefetch = 0 : i64, scratch_operands = 0 : i64, tpu.core_type = #tpu.core_type<tc>, window_params = [{transform_indices = @transform_0, window_bounds = array<i64: 2, 4, 16>}, {pipeline_mode = #tpu.pipeline_mode<synchronous>, transform_indices = @transform_1, window_bounds = array<i64: 4, 2>}, {pipeline_mode = #tpu.pipeline_mode<synchronous>, transform_indices = @transform_2, window_bounds = array<i64: 1, 2>}, {pipeline_mode = #tpu.pipeline_mode<synchronous>, transform_indices = @transform_3, window_bounds = array<i64: 2, 4>}, {pipeline_mode = #tpu.pipeline_mode<synchronous>, transform_indices = @transform_4, window_bounds = array<i64: 1, 4>}, {transform_indices = @transform_5, window_bounds = array<i64: 2, 4, 16>}]} {
    %c0 = arith.constant 0 : index
    %c0_0 = arith.constant 0 : index
    %c0_1 = arith.constant 0 : index
    %0 = vector.load %arg1[%c0, %c0_0, %c0_1] : memref<2x4x16xf32, #tpu.memory_space<vmem>>, vector<2x4x16xf32>
    %cst = arith.constant dense<0.000000e+00> : vector<2x4xf32>
    %1 = vector.multi_reduction <add>, %0, %cst [2] : vector<2x4x16xf32> to vector<2x4xf32>
    %cst_2 = arith.constant 1.600000e+01 : f32
    %2 = vector.broadcast %cst_2 : f32 to vector<2x4xf32>
    %3 = arith.divf %1, %2 : vector<2x4xf32>
    %c0_3 = arith.constant 0 : index
    %c0_4 = arith.constant 0 : index
    %4 = vector.load %arg2[%c0_3, %c0_4] : memref<4x2xf32, #tpu.memory_space<vmem>>, vector<4x2xf32>
    %cst_5 = arith.constant dense<0.000000e+00> : vector<2x2xf32>
    %5 = tpu.matmul %3, %4, %cst_5 {dimension_numbers = #tpu.dot_dimension_numbers<[1], [0], [0], [1], [0, 0, 1, 1], [], []>} : vector<2x4xf32>, vector<4x2xf32>, vector<2x2xf32> -> vector<2x2xf32>
    %c0_6 = arith.constant 0 : index
    %c0_7 = arith.constant 0 : index
    %6 = vector.load %arg3[%c0_6, %c0_7] : memref<1x2xf32, #tpu.memory_space<vmem>>, vector<1x2xf32>
    %7 = vector.broadcast %6 : vector<1x2xf32> to vector<2x2xf32>
    %8 = arith.addf %5, %7 : vector<2x2xf32>
    %cst_8 = arith.constant 0.000000e+00 : f32
    %9 = vector.broadcast %cst_8 : f32 to vector<2x2xf32>
    %10 = arith.maximumf %8, %9 : vector<2x2xf32>
    %c0_9 = arith.constant 0 : index
    %c0_10 = arith.constant 0 : index
    %11 = vector.load %arg4[%c0_9, %c0_10] : memref<2x4xf32, #tpu.memory_space<vmem>>, vector<2x4xf32>
    %cst_11 = arith.constant dense<0.000000e+00> : vector<2x4xf32>
    %12 = tpu.matmul %10, %11, %cst_11 {dimension_numbers = #tpu.dot_dimension_numbers<[1], [0], [0], [1], [0, 0, 1, 1], [], []>} : vector<2x2xf32>, vector<2x4xf32>, vector<2x4xf32> -> vector<2x4xf32>
    %c0_12 = arith.constant 0 : index
    %c0_13 = arith.constant 0 : index
    %13 = vector.load %arg5[%c0_12, %c0_13] : memref<1x4xf32, #tpu.memory_space<vmem>>, vector<1x4xf32>
    %14 = vector.broadcast %13 : vector<1x4xf32> to vector<2x4xf32>
    %15 = arith.addf %12, %14 : vector<2x4xf32>
    %16 = arith.negf %15 : vector<2x4xf32>
    %17 = math.exp %16 : vector<2x4xf32>
    %cst_14 = arith.constant 1.000000e+00 : f32
    %18 = vector.broadcast %cst_14 : f32 to vector<2x4xf32>
    %19 = arith.addf %18, %17 : vector<2x4xf32>
    %20 = arith.divf %18, %19 : vector<2x4xf32>
    %21 = vector.shape_cast %20 : vector<2x4xf32> to vector<2x4x1xf32>
    %22 = vector.broadcast %21 : vector<2x4x1xf32> to vector<2x4x16xf32>
    %23 = arith.mulf %0, %22 : vector<2x4x16xf32>
    %c0_15 = arith.constant 0 : index
    %c0_16 = arith.constant 0 : index
    %c0_17 = arith.constant 0 : index
    %24 = vector.load %arg6[%c0_15, %c0_16, %c0_17] : memref<2x4x16xf32, #tpu.memory_space<vmem>>, vector<2x4x16xf32>
    tpu.vector_store %arg6[%c0_15, %c0_16, %c0_17], %23 {strides = array<i32>} : memref<2x4x16xf32, #tpu.memory_space<vmem>>, vector<2x4x16xf32>,
    return
  }
  func.func @transform_0(%arg0: i32) -> (i32, i32, i32) {
    %c0_i32 = arith.constant 0 : i32
    %c0_i32_0 = arith.constant 0 : i32
    %c0_i32_1 = arith.constant 0 : i32
    return %arg0, %c0_i32, %c0_i32_0 : i32, i32, i32
  }
  func.func @transform_1(%arg0: i32) -> (i32, i32) {
    %c0_i32 = arith.constant 0 : i32
    %c0_i32_0 = arith.constant 0 : i32
    %c0_i32_1 = arith.constant 0 : i32
    return %c0_i32, %c0_i32_0 : i32, i32
  }
  func.func @transform_2(%arg0: i32) -> (i32, i32) {
    %c0_i32 = arith.constant 0 : i32
    %c0_i32_0 = arith.constant 0 : i32
    %c0_i32_1 = arith.constant 0 : i32
    return %c0_i32, %c0_i32_0 : i32, i32
  }
  func.func @transform_3(%arg0: i32) -> (i32, i32) {
    %c0_i32 = arith.constant 0 : i32
    %c0_i32_0 = arith.constant 0 : i32
    %c0_i32_1 = arith.constant 0 : i32
    return %c0_i32, %c0_i32_0 : i32, i32
  }
  func.func @transform_4(%arg0: i32) -> (i32, i32) {
    %c0_i32 = arith.constant 0 : i32
    %c0_i32_0 = arith.constant 0 : i32
    %c0_i32_1 = arith.constant 0 : i32
    return %c0_i32, %c0_i32_0 : i32, i32
  }
  func.func @transform_5(%arg0: i32) -> (i32, i32, i32) {
    %c0_i32 = arith.constant 0 : i32
    %c0_i32_0 = arith.constant 0 : i32
    %c0_i32_1 = arith.constant 0 : i32
    return %arg0, %c0_i32, %c0_i32_0 : i32, i32, i32
  }
}

</mosaic_0001>

<llo_original>
// kernel: tpu_custom_call.1
$region0: #{tpu_custom_call.1}
  #allocation0 [shape = 'u32[]', space=smem, size = 0x4, offset = 0x4, fixed_abs, tag = 'smem constant byte address 0x4 - core index']
  #allocation1 [shape = 'u32[72,128]{1,0:T(1,128)}', space=vmem, size = 0x9000, scoped, tag = 'internal scratch']
  %s0 = inlined_call_operand.hbm [shape: f32[2,4,16], index: 0, kind: input, shape index: {}]
  %s1 = inlined_call_operand.vmem [shape: f32[4,2], index: 1, kind: input, shape index: {}]
  %s2 = inlined_call_operand.vmem [shape: f32[1,2], index: 2, kind: input, shape index: {}]
  %s3 = inlined_call_operand.vmem [shape: f32[2,4], index: 3, kind: input, shape index: {}]
  %s4 = inlined_call_operand.vmem [shape: f32[1,4], index: 4, kind: input, shape index: {}]
  %s5 = inlined_call_operand.hbm [shape: f32[2,4,16], index: 5, kind: output, shape index: {}]
  %s6 = sld [smem:[#allocation0]]
  $region34: #{tpu_custom_call.1} parent=0
    _
  %s8 = ssub.s32 1, %s6
  %s9 = scalar_select 0, %s8, %s6
  $region1: #{tpu_custom_call.1} parent=0
    #allocation2 [shape = 'u8[4096]{0}', space=vmem, size = 0x1000, scoped, tag = 'input window, operand 0, single buffered']
    #allocation3 [shape = 's32[1]{0}', space=sflag, size = 0x4, scoped, tag = 'scoped memory for tpu_custom_call.1']
    #allocation4 [shape = 's32[1]{0}', space=sflag, size = 0x4, scoped, tag = 'scoped memory for tpu_custom_call.1']
    #allocation5 [shape = 'u8[4096]{0}', space=vmem, size = 0x1000, scoped, tag = 'output window, operand 0, single buffered']
    %10 = vsyncpa [#allocation3], 0
    %11 = vsyncpa [#allocation4], 0
    // Predicated region
    $region2: #{tpu_custom_call.1} parent=1 // pred_check
      _
    $region3: #{tpu_custom_call.1} parent=1 // pred_check_branch
      %13 = sbr.rel (0) target = $region5
    $region4: #{tpu_custom_call.1} parent=1 // pred_region
      %15 = vsyncadd [#allocation3], 0
      %s16 = sshll.u32 %s0, 4
      %s17 = int_to_ptr.hbm [resolvable:$true] %s16
      %s18 = sshll.u32 [#allocation2], 4
      %s19 = int_to_ptr.vmem [resolvable:$true] %s18
      %24 = dma.hbm_to_vmem [thread:$0]  %s17, 128, %s19, [#allocation3], 64, 64, 4
    $region5: #{tpu_custom_call.1} parent=1 // pred_fallthru
      _
    // Predicated region
    $region6: #{tpu_custom_call.1} parent=1 // pred_check
      _
    $region7: #{tpu_custom_call.1} parent=1 // pred_check_branch
      %26 = sbr.rel (0) target = $region9
    $region8: #{tpu_custom_call.1} parent=1 // pred_region
      _
    $region9: #{tpu_custom_call.1} parent=1 // pred_fallthru
      _
    // Predicated region
    $region10: #{tpu_custom_call.1} parent=1 // pred_check
      _
    $region11: #{tpu_custom_call.1} parent=1 // pred_check_branch
      %28 = sbr.rel (0) target = $region13
    $region12: #{tpu_custom_call.1} parent=1 // pred_region
      _
    $region13: #{tpu_custom_call.1} parent=1 // pred_fallthru
      _
    // Predicated region
    $region14: #{tpu_custom_call.1} parent=1 // pred_check
      _
    $region15: #{tpu_custom_call.1} parent=1 // pred_check_branch
      %30 = sbr.rel (0) target = $region17
    $region16: #{tpu_custom_call.1} parent=1 // pred_region
      _
    $region17: #{tpu_custom_call.1} parent=1 // pred_fallthru
      _
    // Predicated region
    $region18: #{tpu_custom_call.1} parent=1 // pred_check
      _
    $region19: #{tpu_custom_call.1} parent=1 // pred_check_branch
      %32 = sbr.rel (0) target = $region21
    $region20: #{tpu_custom_call.1} parent=1 // pred_region
      _
    $region21: #{tpu_custom_call.1} parent=1 // pred_fallthru
      _
    // Predicated region
    $region22: #{tpu_custom_call.1} parent=1 // pred_check
      _
    $region23: #{tpu_custom_call.1} parent=1 // pred_check_branch
      %34 = sbr.rel (0) target = $region25
    $region24: #{tpu_custom_call.1} parent=1 // pred_region
      %36 = dma.done [#allocation3], 128
    $region25: #{tpu_custom_call.1} parent=1 // pred_fallthru
      _
    %v37 = vld [vmem:[#allocation2] sm:$0xf]
    %v38 = vld [vmem:[#allocation2 + $0x4] sm:$0xf]
    %vm39 = vcmask 125952
    %v40 = vsel %vm39, %v37, 0.0
    %41 = vadd.xlane.f32.xlu0 %v40
    %v42 = vpop.xlane.xlu0 %41
    %v43 = vsel %vm39, %v38, 0.0
    %44 = vadd.xlane.f32.xlu0 %v43
    %v45 = vpop.xlane.xlu0 %44
    %v46 = vrcp.pop 16.0
    %v47 = vmul.f32 16.0, %v46
    %v48 = vsub.f32 1.0, %v47
    %v49 = vmul.f32 %v46, %v48
    %v50 = vadd.f32 %v46, %v49
    %vm51 = vweird.f32 %v46
    %v52 = vsel %vm51, %v46, %v50
    %v53 = vmul.f32 %v42, %v52
    %v54 = vmul.f32 %v45, %v52
    %v55 = vld [vmem:[%s1] sm:$0xf]
    %v56 = vld [vmem:[%s2] sm:$0x1]
    %v58 = vperm.slane %v56, 0
    %v62 = vlaneseq
    %v63 = vand.u32 %v62, 127
    %v64 = vperm.slane %v53, %v63
    %v65 = vperm.slane %v54, %v63
    %vm66 = vcmask 1041409
    %v67 = vsel %vm66, %v65, %v64
    %vm68 = vcmask 31744
    %v69 = vsel %vm68, %v67, 0
    %vm71 = vcmask 1043456
    %v73 = vsel %vm71, %v55, 0
    %75 = vmatpush.msra.mxu0 0.0
    %76 = vmatpush.msra.mxu0 0.0
    %77 = vmatpush.msra.mxu0 0.0
    %78 = vmatpush.msra.mxu0 0.0
    %79 = vmatpush.msra.mxu0 0.0
    %80 = vmatpush.msra.mxu0 0.0
    %81 = vmatpush.msra.mxu0 0.0
    %82 = vmatpush.msra.mxu0 0.0
    %83 = vmatpush.msra.mxu0 0.0
    %84 = vmatpush.msra.mxu0 0.0
    %85 = vmatpush.msra.mxu0 0.0
    %86 = vmatpush.msra.mxu0 0.0
    %87 = vmatpush.msra.mxu0 0.0
    %88 = vmatpush.msra.mxu0 0.0
    %89 = vmatpush.msra.mxu0 0.0
    %90 = vmatpush.msra.mxu0 %v73
    %91 = vmatmul.f32.gmra.mxu0 %v69
    %v92 = vpop.f32.mrf.mxu0
    %v93 = vadd.f32 %v58, %v92
    %94 = vdwg.mxu0
    %v95 = vmax.f32 %v93, 0.0
    %v96 = vld [vmem:[%s3] sm:$0x3]
    %v97 = vld [vmem:[%s4] sm:$0x1]
    %v99 = vperm.slane %v97, 0
    %vm101 = vcmask 15360
    %v103 = vsel %vm101, %v95, 0
    %vm105 = vcmask 1041408
    %v107 = vsel %vm105, %v96, 0
    %109 = vmatpush.msra.mxu0 0.0
    %110 = vmatpush.msra.mxu0 0.0
    %111 = vmatpush.msra.mxu0 0.0
    %112 = vmatpush.msra.mxu0 0.0
    %113 = vmatpush.msra.mxu0 0.0
    %114 = vmatpush.msra.mxu0 0.0
    %115 = vmatpush.msra.mxu0 0.0
    %116 = vmatpush.msra.mxu0 0.0
    %117 = vmatpush.msra.mxu0 0.0
    %118 = vmatpush.msra.mxu0 0.0
    %119 = vmatpush.msra.mxu0 0.0
    %120 = vmatpush.msra.mxu0 0.0
    %121 = vmatpush.msra.mxu0 0.0
    %122 = vmatpush.msra.mxu0 0.0
    %123 = vmatpush.msra.mxu0 0.0
    %124 = vmatpush.msra.mxu0 %v107
    %125 = vmatmul.f32.gmra.mxu0 %v103
    %v126 = vpop.f32.mrf.mxu0
    %v127 = vadd.f32 %v99, %v126
    %128 = vdwg.mxu0
    %v129 = vxor.u32 %v127, 2147483648
    %v130 = vmul.f32 %v129, 1.442695
    %v131 = vpow.pop %v130
    %v132 = vadd.f32 %v131, 1.0
    %v133 = vrcp.pop %v132
    %v134 = vmul.f32 %v132, %v133
    %v135 = vsub.f32 1.0, %v134
    %v136 = vmul.f32 %v133, %v135
    %v137 = vadd.f32 %v133, %v136
    %vm138 = vweird.f32 %v132
    %vm139 = vweird.f32 %v133
    %vm140 = vmor %vm138, %vm139
    %v141 = vsel %vm140, %v133, %v137
    %v142 = vand.u32 2147483647, %v132
    %vm143 = vcmp.eq.f32.partialorder %v142, 8.507059e+37
    %v144 = vand.u32 %v132, 2147483648
    %v145 = vor.u32 1.1754944e-38, %v144
    %v146 = vsel %vm143, %v145, %v141
    %v147 = vmul.f32 1.0, %v146
    %v148 = vperm.slane %v147, 0
    %v149 = vlaneseq
    %v150 = vshrl.u32 %v149, 7
    %152 = vset.pattern.permute.xlu0 %v150
    %153 = vperm.xlu0 %152, %v148
    %v154 = vpop.permute.xlu0 %153
    %v155 = vperm.slane %v147, 1
    %v156 = vlaneseq
    %v157 = vshrl.u32 %v156, 7
    %159 = vset.pattern.permute.xlu0 %v157
    %160 = vperm.xlu0 %159, %v155
    %v161 = vpop.permute.xlu0 %160
    %v162 = vmul.f32 %v37, %v154
    %v163 = vmul.f32 %v38, %v161
    %164 = vst.msk [vmem:[#allocation5] sm:$0xf] %vm39, %v162
    %165 = vst.msk [vmem:[#allocation5 + $0x4] sm:$0xf] %vm39, %v163
    // Predicated region
    $region26: #{tpu_custom_call.1} parent=1 // pred_check
      _
    $region27: #{tpu_custom_call.1} parent=1 // pred_check_branch
      %167 = sbr.rel (0) target = $region29
    $region28: #{tpu_custom_call.1} parent=1 // pred_region
      %169 = vsyncadd [#allocation4], 0
      %s170 = sshll.u32 [#allocation5], 4
      %s171 = int_to_ptr.vmem [resolvable:$true] %s170
      %s172 = sshll.u32 %s5, 4
      %s173 = int_to_ptr.hbm [resolvable:$true] %s172
      %178 = dma.vmem_to_hbm [thread:$0]  %s171, 128, %s173, [#allocation4], 64, 64, 4
    $region29: #{tpu_custom_call.1} parent=1 // pred_fallthru
      _
    // Predicated region
    $region30: #{tpu_custom_call.1} parent=1 // pred_check
      _
    $region31: #{tpu_custom_call.1} parent=1 // pred_check_branch
      %180 = sbr.rel (0) target = $region33
    $region32: #{tpu_custom_call.1} parent=1 // pred_region
      %182 = dma.done [#allocation4], 128
    $region33: #{tpu_custom_call.1} parent=1 // pred_fallthru
      _
    %183 = vsyncpa [#allocation3], 1
    %184 = vsyncpa [#allocation4], 1

</llo_original>
